<compile_context>
chip_gen: v7x
topology: tpu7x:2x2x1
jax: 0.10.0
libtpu: 0.0.40
codegen_flags: <defaults>
</compile_context>

<pallas_src>
import functools

import jax
import jax.numpy as jnp
import numpy as np
from jax.experimental import pallas as pl
from jax.experimental.pallas import tpu as pltpu


def _expand_swap_kernel(x_ref, o_ref, *, s, scp):
    # x_ref: (tbh, W, C) with C = s*scp   (VMEM tile dims (W, C), lane-dense)
    # o_ref: (tbh, s, W, scp)             (VMEM tile dims (W, scp))
    # Pixel-shuffle swap: o[bh, i, w, :] = x[bh, w, i*scp:(i+1)*scp]
    for i in range(s):  # s is a small static Python int (typically 2)
        o_ref[:, i, :, :] = x_ref[:, :, i * scp:(i + 1) * scp]


def _round_up(x, m):
    return ((x + m - 1) // m) * m


def _vmem_capacity_bytes():
    """Generation-aware VMEM capacity (falls back to the smallest, v7x)."""
    try:
        info = pltpu.get_tpu_info()
        cap = getattr(info, "vmem_capacity_bytes", None)
        if cap:
            return int(cap)
    except Exception:
        pass
    return 64 * 1024 * 1024  # conservative: v7x has 64 MiB per TensorCore


def _pick_bh_tile(bh, w, s, scp, itemsize, vmem_budget, target_bytes):
    """Rows of the flattened (B*H) axis per block.

    Accounts for VMEM tile padding: min sublane tile is 8 (f32) / 16 (bf16) /
    32 (int8) and min lane tile is 128, for both the input (W, C) tiles and the
    output (W, scp) tiles, double-buffered on both sides.
    """
    c = s * scp
    min_sub = max(8, 32 // max(1, itemsize))
    in_row = _round_up(w, min_sub) * _round_up(c, 128) * itemsize
    out_row = s * _round_up(w, min_sub) * _round_up(scp, 128) * itemsize
    per_row_vmem = 2 * (in_row + out_row)              # double buffering, in + out
    rows_vmem = max(1, vmem_budget // per_row_vmem)
    rows_target = max(1, target_bytes // max(1, w * c * itemsize))
    return int(max(1, min(bh, rows_vmem, rows_target)))


def expand_nhwc(x_nhwc, gain=2, *, block_bytes=2 * 1024 * 1024):
    """Expand on a channels-last (B, H, W, C) array -> (B, H*s, W*s, C // s**2).

    Preferred entry point: a channels-last model avoids the NCHW<->NHWC
    interface transposes entirely.
    """
    b, h, w, c = x_nhwc.shape
    s = int(gain)
    if s == 1:
        return x_nhwc
    assert c % (s * s) == 0, "channels must be divisible by gain**2"
    cp = c // (s * s)
    scp = s * cp
    bh = b * h
    itemsize = jnp.dtype(x_nhwc.dtype).itemsize

    # Generation-gated VMEM budget (v7x: 64 MiB physical per TC; v5e/v6e: 128 MiB).
    cap = _vmem_capacity_bytes()
    vmem_limit = int(min(max(cap // 2, 16 * 1024 * 1024), 64 * 1024 * 1024))
    budget = vmem_limit // 2  # headroom for pipeline internals

    # Contiguous views only (no data movement).
    x3 = x_nhwc.reshape(bh, w, c)                      # (B*H, W, C)

    tbh = _pick_bh_tile(bh, w, s, scp, itemsize, budget, block_bytes)
    nblk = pl.cdiv(bh, tbh)
    # Nudge the parallel block count even so v7x's two TensorCores split evenly.
    if nblk > 1 and nblk % 2 == 1:
        tbh = max(1, pl.cdiv(bh, nblk + 1))
        nblk = pl.cdiv(bh, tbh)

    out4 = pl.pallas_call(
        functools.partial(_expand_swap_kernel, s=s, scp=scp),
        out_shape=jax.ShapeDtypeStruct((bh, s, w, scp), x_nhwc.dtype),
        grid=(nblk,),
        in_specs=[
            # Full trailing dims => fully contiguous HBM read per block.
            pl.BlockSpec((tbh, w, c), lambda i: (i, 0, 0)),
        ],
        # Full trailing dims => fully contiguous HBM write per block.
        out_specs=pl.BlockSpec((tbh, s, w, scp), lambda i: (i, 0, 0, 0)),
        compiler_params=pltpu.CompilerParams(
            dimension_semantics=("parallel",),
            vmem_limit_bytes=vmem_limit,
        ),
    )(x3)

    # Contiguous merge of the interleaved dims: (B*H, s, W, s*Cp) -> (B, H*s, W*s, Cp)
    return out4.reshape(b, h * s, w * s, cp)


def expand(x, gain=2, *, block_bytes=2 * 1024 * 1024):
    """PyTorch-matching wrapper. x: (B, C, H, W) NCHW -> (B, C//gain^2, H*gain, W*gain).

    The two transposes below exist only to match the NCHW interface; they are
    full extra HBM round-trips done by XLA. Channels-last callers should use
    expand_nhwc() directly.
    """
    if int(gain) == 1:
        return x
    x_nhwc = jnp.transpose(x, (0, 2, 3, 1))            # (B, H, W, C)
    out_nhwc = expand_nhwc(x_nhwc, gain=gain, block_bytes=block_bytes)
    return jnp.transpose(out_nhwc, (0, 3, 1, 2))       # (B, Cp, H*s, W*s)


def expand_ref(x, gain=2):
    """Pure-JAX reference mirroring the PyTorch forward exactly (NCHW)."""
    b, c, h, w = x.shape
    s = gain
    y = x.reshape(b, s, s, c // s**2, h, w)
    y = jnp.transpose(y, (0, 3, 4, 1, 5, 2))
    return y.reshape(b, c // s**2, h * s, w * s)


if __name__ == "__main__":
    key = jax.random.PRNGKey(0)
    # (shape NCHW, gain, dtype, forced block_bytes or None)
    cases = [
        ((2, 16, 8, 8), 2, jnp.float32, None),         # small, lane-sparse config
        ((1, 256, 12, 20), 2, jnp.bfloat16, None),      # realistic widths: Cp=64, s*Cp=128
        ((2, 16, 13, 16), 2, jnp.float32, 8 * 1024),    # multi-block grid with ragged tail
    ]
    for idx, (shape, gain, dtype, blk) in enumerate(cases):
        key, sub = jax.random.split(key)
        x = jax.random.normal(sub, shape, dtype=jnp.float32).astype(dtype)
        kwargs = {} if blk is None else {"block_bytes": blk}
        out = jax.block_until_ready(expand(x, gain=gain, **kwargs))
        ref = jax.block_until_ready(expand_ref(x, gain=gain))
        b, c, h, w = shape
        assert out.shape == (b, c // gain**2, h * gain, w * gain), (idx, out.shape)
        assert out.dtype == x.dtype, (idx, out.dtype)
        np.testing.assert_array_equal(np.asarray(out), np.asarray(ref))

    print("KERNEL_OK")
</pallas_src>

<mosaic_0001>
module attributes {stable_mosaic.version = 11 : i64} {
  func.func @_expand_swap_kernel(%arg0: i32, %arg1: memref<16x8x16xf32, #tpu.memory_space<vmem>>, %arg2: memref<16x2x8x8xf32, #tpu.memory_space<vmem>>) attributes {dimension_semantics = [#tpu.dimension_semantics<parallel>], iteration_bounds = array<i64: 1>, scalar_prefetch = 0 : i64, scratch_operands = 0 : i64, tpu.core_type = #tpu.core_type<tc>, window_params = [{transform_indices = @transform_0, window_bounds = array<i64: 16, 8, 16>}, {transform_indices = @transform_1, window_bounds = array<i64: 16, 2, 8, 8>}]} {
    %c0 = arith.constant 0 : index
    %c0_0 = arith.constant 0 : index
    %c0_1 = arith.constant 0 : index
    %0 = vector.load %arg1[%c0, %c0_0, %c0_1] : memref<16x8x16xf32, #tpu.memory_space<vmem>>, vector<16x8x8xf32>
    %c0_2 = arith.constant 0 : index
    %c0_3 = arith.constant 0 : index
    %c0_4 = arith.constant 0 : index
    %c0_5 = arith.constant 0 : index
    %1 = vector.load %arg2[%c0_2, %c0_3, %c0_4, %c0_5] : memref<16x2x8x8xf32, #tpu.memory_space<vmem>>, vector<16x1x8x8xf32>
    %2 = vector.shape_cast %1 : vector<16x1x8x8xf32> to vector<16x8x8xf32>
    %3 = vector.shape_cast %0 : vector<16x8x8xf32> to vector<16x1x8x8xf32>
    tpu.vector_store %arg2[%c0_2, %c0_3, %c0_4, %c0_5], %3 {strides = array<i32>} : memref<16x2x8x8xf32, #tpu.memory_space<vmem>>, vector<16x1x8x8xf32>,
    %c0_6 = arith.constant 0 : index
    %c0_7 = arith.constant 0 : index
    %c8 = arith.constant 8 : index
    %4 = vector.load %arg1[%c0_6, %c0_7, %c8] : memref<16x8x16xf32, #tpu.memory_space<vmem>>, vector<16x8x8xf32>
    %c0_8 = arith.constant 0 : index
    %c1 = arith.constant 1 : index
    %c0_9 = arith.constant 0 : index
    %c0_10 = arith.constant 0 : index
    %5 = vector.load %arg2[%c0_8, %c1, %c0_9, %c0_10] : memref<16x2x8x8xf32, #tpu.memory_space<vmem>>, vector<16x1x8x8xf32>
    %6 = vector.shape_cast %5 : vector<16x1x8x8xf32> to vector<16x8x8xf32>
    %7 = vector.shape_cast %4 : vector<16x8x8xf32> to vector<16x1x8x8xf32>
    tpu.vector_store %arg2[%c0_8, %c1, %c0_9, %c0_10], %7 {strides = array<i32>} : memref<16x2x8x8xf32, #tpu.memory_space<vmem>>, vector<16x1x8x8xf32>,
    return
  }
  func.func @transform_0(%arg0: i32) -> (i32, i32, i32) {
    %c0_i32 = arith.constant 0 : i32
    %c0_i32_0 = arith.constant 0 : i32
    %c0_i32_1 = arith.constant 0 : i32
    return %arg0, %c0_i32, %c0_i32_0 : i32, i32, i32
  }
  func.func @transform_1(%arg0: i32) -> (i32, i32, i32, i32) {
    %c0_i32 = arith.constant 0 : i32
    %c0_i32_0 = arith.constant 0 : i32
    %c0_i32_1 = arith.constant 0 : i32
    %c0_i32_2 = arith.constant 0 : i32
    return %arg0, %c0_i32, %c0_i32_0, %c0_i32_1 : i32, i32, i32, i32
  }
}

</mosaic_0001>

<llo_original>
// kernel: tpu_custom_call.1
$region0: #{tpu_custom_call.1}
  #allocation0 [shape = 'u32[]', space=smem, size = 0x4, offset = 0x4, fixed_abs, tag = 'smem constant byte address 0x4 - core index']
  #allocation1 [shape = 'u32[144,128]{1,0:T(1,128)}', space=vmem, size = 0x12000, scoped, tag = 'internal scratch']
  %s0 = inlined_call_operand.hbm [shape: f32[16,8,16], index: 0, kind: input, shape index: {}]
  %s1 = inlined_call_operand.vmem [shape: f32[16,2,8,8], index: 1, kind: output, shape index: {}]
  %s2 = sld [smem:[#allocation0]]
  $region18: #{tpu_custom_call.1} parent=0
    _
  %s4 = ssub.s32 1, %s2
  %s5 = scalar_select 0, %s4, %s2
  $region1: #{tpu_custom_call.1} parent=0
    #allocation2 [shape = 'u8[65536]{0}', space=vmem, size = 0x10000, scoped, tag = 'input window, operand 0, single buffered']
    #allocation3 [shape = 's32[1]{0}', space=sflag, size = 0x4, scoped, tag = 'scoped memory for tpu_custom_call.1']
    %6 = vsyncpa [#allocation3], 0
    // Predicated region
    $region2: #{tpu_custom_call.1} parent=1 // pred_check
      _
    $region3: #{tpu_custom_call.1} parent=1 // pred_check_branch
      %8 = sbr.rel (0) target = $region5
    $region4: #{tpu_custom_call.1} parent=1 // pred_region
      %s10 = ssub.s32 2048, 2048
      %11 = vsyncadd [#allocation3], %s10
      %s12 = sshll.u32 [#allocation2], 4
      %s13 = int_to_ptr.vmem [resolvable:$true] %s12
      %18 = dma.hbm_to_vmem [thread:$0]  %s0, 2048, %s13, [#allocation3], 128, 128, 8
    $region5: #{tpu_custom_call.1} parent=1 // pred_fallthru
      _
    // Predicated region
    $region6: #{tpu_custom_call.1} parent=1 // pred_check
      _
    $region7: #{tpu_custom_call.1} parent=1 // pred_check_branch
      %20 = sbr.rel (0) target = $region9
    $region8: #{tpu_custom_call.1} parent=1 // pred_region
      %21 = dma.done [#allocation3], 2048
    $region9: #{tpu_custom_call.1} parent=1 // pred_fallthru
      _
    %v22 = vld [vmem:[#allocation2] sm:$0xff]
    %v23 = vld [vmem:[#allocation2 + $0x8] sm:$0xff]
    %v24 = vld [vmem:[#allocation2 + $0x10] sm:$0xff]
    %v25 = vld [vmem:[#allocation2 + $0x18] sm:$0xff]
    %v26 = vld [vmem:[#allocation2 + $0x20] sm:$0xff]
    %v27 = vld [vmem:[#allocation2 + $0x28] sm:$0xff]
    %v28 = vld [vmem:[#allocation2 + $0x30] sm:$0xff]
    %v29 = vld [vmem:[#allocation2 + $0x38] sm:$0xff]
    %v30 = vld [vmem:[#allocation2 + $0x40] sm:$0xff]
    %v31 = vld [vmem:[#allocation2 + $0x48] sm:$0xff]
    %v32 = vld [vmem:[#allocation2 + $0x50] sm:$0xff]
    %v33 = vld [vmem:[#allocation2 + $0x58] sm:$0xff]
    %v34 = vld [vmem:[#allocation2 + $0x60] sm:$0xff]
    %v35 = vld [vmem:[#allocation2 + $0x68] sm:$0xff]
    %v36 = vld [vmem:[#allocation2 + $0x70] sm:$0xff]
    %v37 = vld [vmem:[#allocation2 + $0x78] sm:$0xff]
    %vm38 = vcmask 64512
    %39 = vst.msk [vmem:[%s1] sm:$0xff] %vm38, %v22
    %40 = vst.msk [vmem:[%s1 + $0x10] sm:$0xff] %vm38, %v23
    %41 = vst.msk [vmem:[%s1 + $0x20] sm:$0xff] %vm38, %v24
    %42 = vst.msk [vmem:[%s1 + $0x30] sm:$0xff] %vm38, %v25
    %43 = vst.msk [vmem:[%s1 + $0x40] sm:$0xff] %vm38, %v26
    %44 = vst.msk [vmem:[%s1 + $0x50] sm:$0xff] %vm38, %v27
    %45 = vst.msk [vmem:[%s1 + $0x60] sm:$0xff] %vm38, %v28
    %46 = vst.msk [vmem:[%s1 + $0x70] sm:$0xff] %vm38, %v29
    %47 = vst.msk [vmem:[%s1 + $0x80] sm:$0xff] %vm38, %v30
    %48 = vst.msk [vmem:[%s1 + $0x90] sm:$0xff] %vm38, %v31
    %49 = vst.msk [vmem:[%s1 + $0xa0] sm:$0xff] %vm38, %v32
    %50 = vst.msk [vmem:[%s1 + $0xb0] sm:$0xff] %vm38, %v33
    %51 = vst.msk [vmem:[%s1 + $0xc0] sm:$0xff] %vm38, %v34
    %52 = vst.msk [vmem:[%s1 + $0xd0] sm:$0xff] %vm38, %v35
    %53 = vst.msk [vmem:[%s1 + $0xe0] sm:$0xff] %vm38, %v36
    %54 = vst.msk [vmem:[%s1 + $0xf0] sm:$0xff] %vm38, %v37
    %v55 = vld [vmem:[#allocation2] sm:$0xff]
    %v56 = vld [vmem:[#allocation2 + $0x8] sm:$0xff]
    %v57 = vld [vmem:[#allocation2 + $0x10] sm:$0xff]
    %v58 = vld [vmem:[#allocation2 + $0x18] sm:$0xff]
    %v59 = vld [vmem:[#allocation2 + $0x20] sm:$0xff]
    %v60 = vld [vmem:[#allocation2 + $0x28] sm:$0xff]
    %v61 = vld [vmem:[#allocation2 + $0x30] sm:$0xff]
    %v62 = vld [vmem:[#allocation2 + $0x38] sm:$0xff]
    %v63 = vld [vmem:[#allocation2 + $0x40] sm:$0xff]
    %v64 = vld [vmem:[#allocation2 + $0x48] sm:$0xff]
    %v65 = vld [vmem:[#allocation2 + $0x50] sm:$0xff]
    %v66 = vld [vmem:[#allocation2 + $0x58] sm:$0xff]
    %v67 = vld [vmem:[#allocation2 + $0x60] sm:$0xff]
    %v68 = vld [vmem:[#allocation2 + $0x68] sm:$0xff]
    %v69 = vld [vmem:[#allocation2 + $0x70] sm:$0xff]
    %v70 = vld [vmem:[#allocation2 + $0x78] sm:$0xff]
    %87 = vrot.lane.b32.xlu0 %v55, 120
    %v88 = vpop.permute.xlu0 %87
    %89 = vrot.lane.b32.xlu0 %v56, 120
    %v90 = vpop.permute.xlu0 %89
    %91 = vrot.lane.b32.xlu0 %v57, 120
    %v92 = vpop.permute.xlu0 %91
    %93 = vrot.lane.b32.xlu0 %v58, 120
    %v94 = vpop.permute.xlu0 %93
    %95 = vrot.lane.b32.xlu0 %v59, 120
    %v96 = vpop.permute.xlu0 %95
    %97 = vrot.lane.b32.xlu0 %v60, 120
    %v98 = vpop.permute.xlu0 %97
    %99 = vrot.lane.b32.xlu0 %v61, 120
    %v100 = vpop.permute.xlu0 %99
    %101 = vrot.lane.b32.xlu0 %v62, 120
    %v102 = vpop.permute.xlu0 %101
    %103 = vrot.lane.b32.xlu0 %v63, 120
    %v104 = vpop.permute.xlu0 %103
    %105 = vrot.lane.b32.xlu0 %v64, 120
    %v106 = vpop.permute.xlu0 %105
    %107 = vrot.lane.b32.xlu0 %v65, 120
    %v108 = vpop.permute.xlu0 %107
    %109 = vrot.lane.b32.xlu0 %v66, 120
    %v110 = vpop.permute.xlu0 %109
    %111 = vrot.lane.b32.xlu0 %v67, 120
    %v112 = vpop.permute.xlu0 %111
    %113 = vrot.lane.b32.xlu0 %v68, 120
    %v114 = vpop.permute.xlu0 %113
    %115 = vrot.lane.b32.xlu0 %v69, 120
    %v116 = vpop.permute.xlu0 %115
    %117 = vrot.lane.b32.xlu0 %v70, 120
    %v118 = vpop.permute.xlu0 %117
    %s135 = scalar_lea.vmem %s1, 8
    %136 = vst.msk [vmem:[%s135] sm:$0xff] %vm38, %v88
    %137 = vst.msk [vmem:[%s135 + $0x10] sm:$0xff] %vm38, %v90
    %138 = vst.msk [vmem:[%s135 + $0x20] sm:$0xff] %vm38, %v92
    %139 = vst.msk [vmem:[%s135 + $0x30] sm:$0xff] %vm38, %v94
    %140 = vst.msk [vmem:[%s135 + $0x40] sm:$0xff] %vm38, %v96
    %141 = vst.msk [vmem:[%s135 + $0x50] sm:$0xff] %vm38, %v98
    %142 = vst.msk [vmem:[%s135 + $0x60] sm:$0xff] %vm38, %v100
    %143 = vst.msk [vmem:[%s135 + $0x70] sm:$0xff] %vm38, %v102
    %144 = vst.msk [vmem:[%s135 + $0x80] sm:$0xff] %vm38, %v104
    %145 = vst.msk [vmem:[%s135 + $0x90] sm:$0xff] %vm38, %v106
    %146 = vst.msk [vmem:[%s135 + $0xa0] sm:$0xff] %vm38, %v108
    %147 = vst.msk [vmem:[%s135 + $0xb0] sm:$0xff] %vm38, %v110
    %148 = vst.msk [vmem:[%s135 + $0xc0] sm:$0xff] %vm38, %v112
    %149 = vst.msk [vmem:[%s135 + $0xd0] sm:$0xff] %vm38, %v114
    %150 = vst.msk [vmem:[%s135 + $0xe0] sm:$0xff] %vm38, %v116
    %151 = vst.msk [vmem:[%s135 + $0xf0] sm:$0xff] %vm38, %v118
    // Predicated region
    $region10: #{tpu_custom_call.1} parent=1 // pred_check
      _
    $region11: #{tpu_custom_call.1} parent=1 // pred_check_branch
      %153 = sbr.rel (0) target = $region13
    $region12: #{tpu_custom_call.1} parent=1 // pred_region
      _
    $region13: #{tpu_custom_call.1} parent=1 // pred_fallthru
      _
    // Predicated region
    $region14: #{tpu_custom_call.1} parent=1 // pred_check
      _
    $region15: #{tpu_custom_call.1} parent=1 // pred_check_branch
      %155 = sbr.rel (0) target = $region17
    $region16: #{tpu_custom_call.1} parent=1 // pred_region
      _
    $region17: #{tpu_custom_call.1} parent=1 // pred_fallthru
      _
    %156 = vsyncpa [#allocation3], 1

</llo_original>
